<compile_context>
chip_gen: v7x
topology: tpu7x:2x2x1
jax: 0.10.0
libtpu: 0.0.40
codegen_flags: <defaults>
</compile_context>

<pallas_src>
import jax
import jax.numpy as jnp
from jax import lax
from jax.experimental import pallas as pl
from jax.experimental.pallas import tpu as pltpu


def _mlp_kernel(x_ref, w1_ref, b1_ref, w2_ref, b2_ref, w3t_ref, b3t_ref, ot_ref):
    """x_ref: (tb, 800); w1 (800,32); w2 (32,32); w3t (out_dim,32);
    b1/b2 (1,32); b3t (out_dim,1); ot_ref: (out_dim, tb) lane-dense output."""
    # fc1 + ReLU.  x / w1 may arrive as bf16 (single MXU pass); accumulate f32.
    h1 = jnp.dot(x_ref[...], w1_ref[...], preferred_element_type=jnp.float32)
    h1 = jnp.maximum(h1 + b1_ref[...].astype(jnp.float32), 0.0)

    # Dropout(p=0.5): module evaluated in inference mode -> identity.
    # TODO(synk): training-mode dropout would use pltpu.prng_seed/prng_random_bits.

    # fc2 + ReLU.  Cast activations to the weight dtype (single-pass bf16
    # matmul when weights are bf16; identity cast when f32).
    h2 = jnp.dot(h1.astype(w2_ref.dtype), w2_ref[...],
                 preferred_element_type=jnp.float32)
    h2 = jnp.maximum(h2 + b2_ref[...].astype(jnp.float32), 0.0)

    # fc3, produced directly in lane-dense (out_dim, tb) form:
    #   ot[o, b] = sum_k w3t[o, k] * h2[b, k]     (A @ B.T, native MXU form)
    # Batch lands on the lane axis -> dense 128-lane stores instead of the
    # (tb, 1) masked stores, and the output VMEM buffer stops lane-padding.
    ot = lax.dot_general(
        w3t_ref[...], h2.astype(w3t_ref.dtype),
        dimension_numbers=(((1,), (1,)), ((), ())),
        preferred_element_type=jnp.float32)
    ot_ref[...] = ot + b3t_ref[...].astype(jnp.float32)


def _choose_batch_tile(batch, batch_tile):
    """Pick the batch tile.

    * Lane-dense output block (out_dim, tb) needs tb to be a multiple of 128
      unless it covers the full batch.
    * Moderate/large batches get >=2 grid steps (aim for >=4) so both v7x
      TensorCores get work and DMA/compute pipelining kicks in.
    * Capped at `batch_tile` so the double-buffered x tile fits scoped VMEM.
    """
    if batch < 2 * 128:
        return batch                                   # single full block (alignment-exempt)
    batch_tile = max(128, (batch_tile // 128) * 128)
    want = max(128, (pl.cdiv(batch, 4) // 128) * 128)  # aim for >= 4 grid steps
    return min(batch_tile, want)


def seq_32_32_forward(x_nchw, params, *, batch_tile=None,
                      vmem_limit_bytes=48 << 20):
    """Forward pass of Seq_32_32 (inference; dropout = identity).

    x_nchw: (B, C, H, W) with C*H*W == 800.  The kernel is HBM-bandwidth bound
            on streaming x, so feed bf16 x *and* bf16 params from the producer
            whenever possible (near-2x wall clock, half the VMEM per tile);
            MXU accumulation is f32 either way.
    params: (w1, b1, w2, b2, w3, b3); weights (in, out), biases (1, out).
    Returns (B, output_dim) float32.
    """
    w1, b1, w2, b2, w3, b3 = params
    B = x_nchw.shape[0]
    x_flat = x_nchw.reshape(B, -1)
    feat = x_flat.shape[1]
    assert feat == 800, f"expected 800 features, got {feat}"
    out_dim = w3.shape[1]

    # fc3 params transposed in the wrapper so the kernel writes the lane-dense
    # (out_dim, tb) output with zero in-kernel transposes (layout plumbing only).
    w3t = w3.T              # (out_dim, 32)
    b3t = b3.T              # (out_dim, 1)

    if batch_tile is None:
        # Double-buffered x tile (800 lanes pad to 896):
        #   f32 @ 4096 rows ~ 29 MiB, bf16 @ 8192 rows ~ 29 MiB
        # -> fits the 48 MiB scoped limit and v7x's 64 MiB physical VMEM.
        batch_tile = 8192 if jnp.dtype(x_flat.dtype).itemsize <= 2 else 4096
    tb = _choose_batch_tile(B, batch_tile)
    grid = (pl.cdiv(B, tb),)

    weight_bytes = sum(int(a.size) * a.dtype.itemsize
                       for a in (w1, b1, w2, b2, w3, b3))
    cost = pl.CostEstimate(
        flops=2 * B * (feat * 32 + 32 * 32 + 32 * out_dim),
        transcendentals=0,
        bytes_accessed=int(x_flat.size) * x_flat.dtype.itemsize
        + B * out_dim * 4 + weight_bytes,
    )

    out_t = pl.pallas_call(
        _mlp_kernel,
        out_shape=jax.ShapeDtypeStruct((out_dim, B), jnp.float32),
        grid=grid,
        in_specs=[
            # x: batch-tiled -> double-buffered; the HBM fetch of tile i+1
            # overlaps compute of tile i (this stream IS the wall clock).
            pl.BlockSpec((tb, feat), lambda i: (i, 0)),
            # Weights / biases: full blocks with constant block index ->
            # fetched once, VMEM-resident across the whole grid.
            pl.BlockSpec(w1.shape, lambda i: (0, 0)),
            pl.BlockSpec(b1.shape, lambda i: (0, 0)),
            pl.BlockSpec(w2.shape, lambda i: (0, 0)),
            pl.BlockSpec(b2.shape, lambda i: (0, 0)),
            pl.BlockSpec(w3t.shape, lambda i: (0, 0)),
            pl.BlockSpec(b3t.shape, lambda i: (0, 0)),
        ],
        # Lane-dense output: batch on the lane axis, tiny out_dim on sublanes.
        out_specs=pl.BlockSpec((out_dim, tb), lambda i: (0, i)),
        compiler_params=pltpu.CompilerParams(
            # Batch axis is embarrassingly parallel -> megacore sharding.
            dimension_semantics=("parallel",),
            # Big x tiles exceed the 16/32 MiB default scoped VMEM; 48 MiB
            # leaves headroom under v7x's 64 MiB physical VMEM.
            vmem_limit_bytes=vmem_limit_bytes,
        ),
        cost_estimate=cost,
    )(x_flat, w1, b1, w2, b2, w3t, b3t)

    # Back to the (B, out_dim) module contract; negligible bytes vs the x stream.
    return out_t.T


def init_params(key, output_dim=1):
    """nn.Linear-style init (uniform +/- 1/sqrt(fan_in)); weights stored (in, out)."""
    def linear(key, fan_in, fan_out):
        kw, kb = jax.random.split(key)
        bound = 1.0 / jnp.sqrt(fan_in)
        w = jax.random.uniform(kw, (fan_in, fan_out), jnp.float32, -bound, bound)
        b = jax.random.uniform(kb, (1, fan_out), jnp.float32, -bound, bound)
        return w, b

    k1, k2, k3 = jax.random.split(key, 3)
    w1, b1 = linear(k1, 800, 32)
    w2, b2 = linear(k2, 32, 32)
    w3, b3 = linear(k3, 32, output_dim)
    return (w1, b1, w2, b2, w3, b3)


def reference_forward(x_nchw, params):
    """Pure-JAX reference (f32 math, dropout = identity)."""
    w1, b1, w2, b2, w3, b3 = [p.astype(jnp.float32) for p in params]
    x = x_nchw.reshape(x_nchw.shape[0], -1).astype(jnp.float32)
    h1 = jnp.maximum(x @ w1 + b1, 0.0)
    h2 = jnp.maximum(h1 @ w2 + b2, 0.0)
    return h2 @ w3 + b3


if __name__ == "__main__":
    key = jax.random.PRNGKey(0)
    kx, kp = jax.random.split(key)

    params = init_params(kp, output_dim=1)

    # Tiny batch: single full-block path.  NCHW with C*H*W = 2*20*20 = 800.
    x = jax.random.normal(kx, (2, 2, 20, 20), jnp.float32)
    out = jax.block_until_ready(seq_32_32_forward(x, params))
    ref = reference_forward(x, params)
    assert out.shape == (2, 1), out.shape
    assert jnp.allclose(out, ref, atol=1e-4, rtol=1e-4)

    # Moderate batch: exercises the multi-step grid (tb=128, ragged last tile)
    # and the lane-dense (out_dim, B) output writeback + wrapper transpose.
    x2 = jax.random.normal(kx, (300, 2, 20, 20), jnp.float32)
    out2 = jax.block_until_ready(seq_32_32_forward(x2, params))
    ref2 = reference_forward(x2, params)
    assert out2.shape == (300, 1), out2.shape
    assert jnp.allclose(out2, ref2, atol=1e-4, rtol=1e-4)

    # bf16 x + bf16 params: the preferred deployment path (halves the dominant
    # HBM stream); f32 MXU accumulation, checked loosely against an f32
    # reference built from the same bf16-rounded inputs.
    x_bf16 = x2.astype(jnp.bfloat16)
    params_bf16 = tuple(p.astype(jnp.bfloat16) for p in params)
    out_bf = jax.block_until_ready(seq_32_32_forward(x_bf16, params_bf16))
    ref_bf = reference_forward(x_bf16.astype(jnp.float32), params_bf16)
    assert out_bf.shape == (300, 1), out_bf.shape
    assert jnp.allclose(out_bf, ref_bf, atol=3e-2, rtol=3e-2)

    print("KERNEL_OK")
</pallas_src>

<mosaic_0001>
module attributes {stable_mosaic.version = 11 : i64} {
  func.func @_mlp_kernel(%arg0: i32, %arg1: memref<2x800xf32, #tpu.memory_space<vmem>>, %arg2: memref<800x32xf32, #tpu.memory_space<vmem>>, %arg3: memref<1x32xf32, #tpu.memory_space<vmem>>, %arg4: memref<32x32xf32, #tpu.memory_space<vmem>>, %arg5: memref<1x32xf32, #tpu.memory_space<vmem>>, %arg6: memref<1x32xf32, #tpu.memory_space<vmem>>, %arg7: memref<1x1xf32, #tpu.memory_space<vmem>>, %arg8: memref<1x2xf32, #tpu.memory_space<vmem>>) attributes {dimension_semantics = [#tpu.dimension_semantics<parallel>], iteration_bounds = array<i64: 1>, scalar_prefetch = 0 : i64, scratch_operands = 0 : i64, tpu.core_type = #tpu.core_type<tc>, window_params = [{transform_indices = @transform_0, window_bounds = array<i64: 2, 800>}, {pipeline_mode = #tpu.pipeline_mode<synchronous>, transform_indices = @transform_1, window_bounds = array<i64: 800, 32>}, {pipeline_mode = #tpu.pipeline_mode<synchronous>, transform_indices = @transform_2, window_bounds = array<i64: 1, 32>}, {pipeline_mode = #tpu.pipeline_mode<synchronous>, transform_indices = @transform_3, window_bounds = array<i64: 32, 32>}, {pipeline_mode = #tpu.pipeline_mode<synchronous>, transform_indices = @transform_4, window_bounds = array<i64: 1, 32>}, {pipeline_mode = #tpu.pipeline_mode<synchronous>, transform_indices = @transform_5, window_bounds = array<i64: 1, 32>}, {pipeline_mode = #tpu.pipeline_mode<synchronous>, transform_indices = @transform_6, window_bounds = array<i64: 1, 1>}, {transform_indices = @transform_7, window_bounds = array<i64: 1, 2>}]} {
    %c0 = arith.constant 0 : index
    %c0_0 = arith.constant 0 : index
    %0 = vector.load %arg1[%c0, %c0_0] : memref<2x800xf32, #tpu.memory_space<vmem>>, vector<2x800xf32>
    %c0_1 = arith.constant 0 : index
    %c0_2 = arith.constant 0 : index
    %1 = vector.load %arg2[%c0_1, %c0_2] : memref<800x32xf32, #tpu.memory_space<vmem>>, vector<800x32xf32>
    %cst = arith.constant dense<0.000000e+00> : vector<2x32xf32>
    %2 = tpu.matmul %0, %1, %cst {dimension_numbers = #tpu.dot_dimension_numbers<[1], [0], [0], [1], [0, 0, 1, 1], [], []>} : vector<2x800xf32>, vector<800x32xf32>, vector<2x32xf32> -> vector<2x32xf32>
    %c0_3 = arith.constant 0 : index
    %c0_4 = arith.constant 0 : index
    %3 = vector.load %arg3[%c0_3, %c0_4] : memref<1x32xf32, #tpu.memory_space<vmem>>, vector<1x32xf32>
    %4 = vector.broadcast %3 : vector<1x32xf32> to vector<2x32xf32>
    %5 = arith.addf %2, %4 : vector<2x32xf32>
    %cst_5 = arith.constant 0.000000e+00 : f32
    %6 = vector.broadcast %cst_5 : f32 to vector<2x32xf32>
    %7 = arith.maximumf %5, %6 : vector<2x32xf32>
    %c0_6 = arith.constant 0 : index
    %c0_7 = arith.constant 0 : index
    %8 = vector.load %arg4[%c0_6, %c0_7] : memref<32x32xf32, #tpu.memory_space<vmem>>, vector<32x32xf32>
    %cst_8 = arith.constant dense<0.000000e+00> : vector<2x32xf32>
    %9 = tpu.matmul %7, %8, %cst_8 {dimension_numbers = #tpu.dot_dimension_numbers<[1], [0], [0], [1], [0, 0, 1, 1], [], []>} : vector<2x32xf32>, vector<32x32xf32>, vector<2x32xf32> -> vector<2x32xf32>
    %c0_9 = arith.constant 0 : index
    %c0_10 = arith.constant 0 : index
    %10 = vector.load %arg5[%c0_9, %c0_10] : memref<1x32xf32, #tpu.memory_space<vmem>>, vector<1x32xf32>
    %11 = vector.broadcast %10 : vector<1x32xf32> to vector<2x32xf32>
    %12 = arith.addf %9, %11 : vector<2x32xf32>
    %cst_11 = arith.constant 0.000000e+00 : f32
    %13 = vector.broadcast %cst_11 : f32 to vector<2x32xf32>
    %14 = arith.maximumf %12, %13 : vector<2x32xf32>
    %c0_12 = arith.constant 0 : index
    %c0_13 = arith.constant 0 : index
    %15 = vector.load %arg6[%c0_12, %c0_13] : memref<1x32xf32, #tpu.memory_space<vmem>>, vector<1x32xf32>
    %cst_14 = arith.constant dense<0.000000e+00> : vector<1x2xf32>
    %16 = tpu.matmul %15, %14, %cst_14 {dimension_numbers = #tpu.dot_dimension_numbers<[1], [1], [0], [0], [0, 0, 1, 0], [], []>} : vector<1x32xf32>, vector<2x32xf32>, vector<1x2xf32> -> vector<1x2xf32>
    %c0_15 = arith.constant 0 : index
    %c0_16 = arith.constant 0 : index
    %17 = vector.load %arg7[%c0_15, %c0_16] : memref<1x1xf32, #tpu.memory_space<vmem>>, vector<1x1xf32>
    %18 = vector.broadcast %17 : vector<1x1xf32> to vector<1x2xf32>
    %19 = arith.addf %16, %18 : vector<1x2xf32>
    %c0_17 = arith.constant 0 : index
    %c0_18 = arith.constant 0 : index
    %20 = vector.load %arg8[%c0_17, %c0_18] : memref<1x2xf32, #tpu.memory_space<vmem>>, vector<1x2xf32>
    tpu.vector_store %arg8[%c0_17, %c0_18], %19 {strides = array<i32>} : memref<1x2xf32, #tpu.memory_space<vmem>>, vector<1x2xf32>,
    return
  }
  func.func @transform_0(%arg0: i32) -> (i32, i32) {
    %c0_i32 = arith.constant 0 : i32
    %c0_i32_0 = arith.constant 0 : i32
    return %arg0, %c0_i32 : i32, i32
  }
  func.func @transform_1(%arg0: i32) -> (i32, i32) {
    %c0_i32 = arith.constant 0 : i32
    %c0_i32_0 = arith.constant 0 : i32
    %c0_i32_1 = arith.constant 0 : i32
    return %c0_i32, %c0_i32_0 : i32, i32
  }
  func.func @transform_2(%arg0: i32) -> (i32, i32) {
    %c0_i32 = arith.constant 0 : i32
    %c0_i32_0 = arith.constant 0 : i32
    %c0_i32_1 = arith.constant 0 : i32
    return %c0_i32, %c0_i32_0 : i32, i32
  }
  func.func @transform_3(%arg0: i32) -> (i32, i32) {
    %c0_i32 = arith.constant 0 : i32
    %c0_i32_0 = arith.constant 0 : i32
    %c0_i32_1 = arith.constant 0 : i32
    return %c0_i32, %c0_i32_0 : i32, i32
  }
  func.func @transform_4(%arg0: i32) -> (i32, i32) {
    %c0_i32 = arith.constant 0 : i32
    %c0_i32_0 = arith.constant 0 : i32
    %c0_i32_1 = arith.constant 0 : i32
    return %c0_i32, %c0_i32_0 : i32, i32
  }
  func.func @transform_5(%arg0: i32) -> (i32, i32) {
    %c0_i32 = arith.constant 0 : i32
    %c0_i32_0 = arith.constant 0 : i32
    %c0_i32_1 = arith.constant 0 : i32
    return %c0_i32, %c0_i32_0 : i32, i32
  }
  func.func @transform_6(%arg0: i32) -> (i32, i32) {
    %c0_i32 = arith.constant 0 : i32
    %c0_i32_0 = arith.constant 0 : i32
    %c0_i32_1 = arith.constant 0 : i32
    return %c0_i32, %c0_i32_0 : i32, i32
  }
  func.func @transform_7(%arg0: i32) -> (i32, i32) {
    %c0_i32 = arith.constant 0 : i32
    %c0_i32_0 = arith.constant 0 : i32
    return %c0_i32, %arg0 : i32, i32
  }
}

</mosaic_0001>

<llo_original>
// kernel: tpu_custom_call.1
$region0: #{tpu_custom_call.1}
  #allocation0 [shape = 'u32[]', space=smem, size = 0x4, offset = 0x4, fixed_abs, tag = 'smem constant byte address 0x4 - core index']
  #allocation1 [shape = 'u32[144,128]{1,0:T(1,128)}', space=vmem, size = 0x12000, scoped, tag = 'internal scratch']
  #allocation2 [shape = 'f32[1,1]{1,0:T(1,128)S(1)}', space=vmem, size = 0x200, scoped, tag = 'scoped memory for tpu_custom_call.1']
  %s0 = inlined_call_operand.vmem [shape: f32[2,800], index: 0, kind: input, shape index: {}]
  %s1 = inlined_call_operand.vmem [shape: f32[800,32], index: 1, kind: input, shape index: {}]
  %s2 = inlined_call_operand.vmem [shape: f32[1,32], index: 2, kind: input, shape index: {}]
  %s3 = inlined_call_operand.vmem [shape: f32[32,32], index: 3, kind: input, shape index: {}]
  %s4 = inlined_call_operand.vmem [shape: f32[1,32], index: 4, kind: input, shape index: {}]
  %s5 = inlined_call_operand.vmem [shape: f32[1,32], index: 5, kind: input, shape index: {}]
  %s6 = inlined_call_operand.<no memory space> [shape: f32[1,1], index: 6, kind: input, shape index: {}]
  %s7 = inlined_call_operand.hbm [shape: f32[1,2], index: 7, kind: output, shape index: {}]
  %s8 = sld [smem:[#allocation0]]
  $region38: #{tpu_custom_call.1} parent=0
    _
  %s10 = ssub.s32 1, %s8
  %s11 = scalar_select 0, %s10, %s8
  %v12 = vstv %s6
  %13 = vst [vmem:[#allocation2] sm:$0x1] %v12
  $region1: #{tpu_custom_call.1} parent=0
    #allocation3 [shape = 'u8[512]{0}', space=vmem, size = 0x400, scoped, tag = 'output window, operand 0, single buffered']
    #allocation4 [shape = 's32[1]{0}', space=sflag, size = 0x4, scoped, tag = 'scoped memory for tpu_custom_call.1']
    %14 = vsyncpa [#allocation4], 0
    // Predicated region
    $region2: #{tpu_custom_call.1} parent=1 // pred_check
      _
    $region3: #{tpu_custom_call.1} parent=1 // pred_check_branch
      %16 = sbr.rel (0) target = $region5
    $region4: #{tpu_custom_call.1} parent=1 // pred_region
      _
    $region5: #{tpu_custom_call.1} parent=1 // pred_fallthru
      _
    // Predicated region
    $region6: #{tpu_custom_call.1} parent=1 // pred_check
      _
    $region7: #{tpu_custom_call.1} parent=1 // pred_check_branch
      %18 = sbr.rel (0) target = $region9
    $region8: #{tpu_custom_call.1} parent=1 // pred_region
      _
    $region9: #{tpu_custom_call.1} parent=1 // pred_fallthru
      _
    // Predicated region
    $region10: #{tpu_custom_call.1} parent=1 // pred_check
      _
    $region11: #{tpu_custom_call.1} parent=1 // pred_check_branch
      %20 = sbr.rel (0) target = $region13
    $region12: #{tpu_custom_call.1} parent=1 // pred_region
      _
    $region13: #{tpu_custom_call.1} parent=1 // pred_fallthru
      _
    // Predicated region
    $region14: #{tpu_custom_call.1} parent=1 // pred_check
      _
    $region15: #{tpu_custom_call.1} parent=1 // pred_check_branch
      %22 = sbr.rel (0) target = $region17
    $region16: #{tpu_custom_call.1} parent=1 // pred_region
      _
    $region17: #{tpu_custom_call.1} parent=1 // pred_fallthru
      _
    // Predicated region
    $region18: #{tpu_custom_call.1} parent=1 // pred_check
      _
    $region19: #{tpu_custom_call.1} parent=1 // pred_check_branch
      %24 = sbr.rel (0) target = $region21
    $region20: #{tpu_custom_call.1} parent=1 // pred_region
      _
    $region21: #{tpu_custom_call.1} parent=1 // pred_fallthru
      _
    // Predicated region
    $region22: #{tpu_custom_call.1} parent=1 // pred_check
      _
    $region23: #{tpu_custom_call.1} parent=1 // pred_check_branch
      %26 = sbr.rel (0) target = $region25
    $region24: #{tpu_custom_call.1} parent=1 // pred_region
      _
    $region25: #{tpu_custom_call.1} parent=1 // pred_fallthru
      _
    // Predicated region
    $region26: #{tpu_custom_call.1} parent=1 // pred_check
      _
    $region27: #{tpu_custom_call.1} parent=1 // pred_check_branch
      %28 = sbr.rel (0) target = $region29
    $region28: #{tpu_custom_call.1} parent=1 // pred_region
      _
    $region29: #{tpu_custom_call.1} parent=1 // pred_fallthru
      _
    %v29 = vld [vmem:[%s0] sm:$0xff]
    %v30 = vld [vmem:[%s0 + $0x8] sm:$0x3f]
    %v31 = vld [vmem:[%s1] sm:$0xff]
    %v32 = vld [vmem:[%s1 + $0x8] sm:$0xff]
    %v33 = vld [vmem:[%s1 + $0x10] sm:$0xff]
    %v34 = vld [vmem:[%s1 + $0x18] sm:$0xff]
    %v35 = vld [vmem:[%s1 + $0x20] sm:$0xff]
    %v36 = vld [vmem:[%s1 + $0x28] sm:$0xff]
    %v37 = vld [vmem:[%s1 + $0x30] sm:$0xff]
    %v38 = vld [vmem:[%s1 + $0x38] sm:$0xff]
    %v39 = vld [vmem:[%s1 + $0x40] sm:$0xff]
    %v40 = vld [vmem:[%s1 + $0x48] sm:$0xff]
    %v41 = vld [vmem:[%s1 + $0x50] sm:$0xff]
    %v42 = vld [vmem:[%s1 + $0x58] sm:$0xff]
    %v43 = vld [vmem:[%s1 + $0x60] sm:$0xff]
    %v44 = vld [vmem:[%s1 + $0x68] sm:$0xff]
    %v45 = vld [vmem:[%s1 + $0x70] sm:$0xff]
    %v46 = vld [vmem:[%s1 + $0x78] sm:$0xff]
    %v47 = vld [vmem:[%s1 + $0x80] sm:$0xff]
    %v48 = vld [vmem:[%s1 + $0x88] sm:$0xff]
    %v49 = vld [vmem:[%s1 + $0x90] sm:$0xff]
    %v50 = vld [vmem:[%s1 + $0x98] sm:$0xff]
    %v51 = vld [vmem:[%s1 + $0xa0] sm:$0xff]
    %v52 = vld [vmem:[%s1 + $0xa8] sm:$0xff]
    %v53 = vld [vmem:[%s1 + $0xb0] sm:$0xff]
    %v54 = vld [vmem:[%s1 + $0xb8] sm:$0xff]
    %v55 = vld [vmem:[%s1 + $0xc0] sm:$0xff]
    %v56 = vld [vmem:[%s1 + $0xc8] sm:$0xff]
    %v57 = vld [vmem:[%s1 + $0xd0] sm:$0xff]
    %v58 = vld [vmem:[%s1 + $0xd8] sm:$0xff]
    %v59 = vld [vmem:[%s1 + $0xe0] sm:$0xff]
    %v60 = vld [vmem:[%s1 + $0xe8] sm:$0xff]
    %v61 = vld [vmem:[%s1 + $0xf0] sm:$0xff]
    %v62 = vld [vmem:[%s1 + $0xf8] sm:$0xff]
    %v63 = vld [vmem:[%s1 + $0x100] sm:$0xff]
    %v64 = vld [vmem:[%s1 + $0x108] sm:$0xff]
    %v65 = vld [vmem:[%s1 + $0x110] sm:$0xff]
    %v66 = vld [vmem:[%s1 + $0x118] sm:$0xff]
    %v67 = vld [vmem:[%s1 + $0x120] sm:$0xff]
    %v68 = vld [vmem:[%s1 + $0x128] sm:$0xff]
    %v69 = vld [vmem:[%s1 + $0x130] sm:$0xff]
    %v70 = vld [vmem:[%s1 + $0x138] sm:$0xff]
    %v71 = vld [vmem:[%s1 + $0x140] sm:$0xff]
    %v72 = vld [vmem:[%s1 + $0x148] sm:$0xff]
    %v73 = vld [vmem:[%s1 + $0x150] sm:$0xff]
    %v74 = vld [vmem:[%s1 + $0x158] sm:$0xff]
    %v75 = vld [vmem:[%s1 + $0x160] sm:$0xff]
    %v76 = vld [vmem:[%s1 + $0x168] sm:$0xff]
    %v77 = vld [vmem:[%s1 + $0x170] sm:$0xff]
    %v78 = vld [vmem:[%s1 + $0x178] sm:$0xff]
    %v79 = vld [vmem:[%s1 + $0x180] sm:$0xff]
    %v80 = vld [vmem:[%s1 + $0x188] sm:$0xff]
    %v81 = vld [vmem:[%s1 + $0x190] sm:$0xff]
    %v82 = vld [vmem:[%s1 + $0x198] sm:$0xff]
    %v83 = vld [vmem:[%s1 + $0x1a0] sm:$0xff]
    %v84 = vld [vmem:[%s1 + $0x1a8] sm:$0xff]
    %v85 = vld [vmem:[%s1 + $0x1b0] sm:$0xff]
    %v86 = vld [vmem:[%s1 + $0x1b8] sm:$0xff]
    %v87 = vld [vmem:[%s1 + $0x1c0] sm:$0xff]
    %v88 = vld [vmem:[%s1 + $0x1c8] sm:$0xff]
    %v89 = vld [vmem:[%s1 + $0x1d0] sm:$0xff]
    %v90 = vld [vmem:[%s1 + $0x1d8] sm:$0xff]
    %v91 = vld [vmem:[%s1 + $0x1e0] sm:$0xff]
    %v92 = vld [vmem:[%s1 + $0x1e8] sm:$0xff]
    %v93 = vld [vmem:[%s1 + $0x1f0] sm:$0xff]
    %v94 = vld [vmem:[%s1 + $0x1f8] sm:$0xff]
    %v95 = vld [vmem:[%s1 + $0x200] sm:$0xff]
    %v96 = vld [vmem:[%s1 + $0x208] sm:$0xff]
    %v97 = vld [vmem:[%s1 + $0x210] sm:$0xff]
    %v98 = vld [vmem:[%s1 + $0x218] sm:$0xff]
    %v99 = vld [vmem:[%s1 + $0x220] sm:$0xff]
    %v100 = vld [vmem:[%s1 + $0x228] sm:$0xff]
    %v101 = vld [vmem:[%s1 + $0x230] sm:$0xff]
    %v102 = vld [vmem:[%s1 + $0x238] sm:$0xff]
    %v103 = vld [vmem:[%s1 + $0x240] sm:$0xff]
    %v104 = vld [vmem:[%s1 + $0x248] sm:$0xff]
    %v105 = vld [vmem:[%s1 + $0x250] sm:$0xff]
    %v106 = vld [vmem:[%s1 + $0x258] sm:$0xff]
    %v107 = vld [vmem:[%s1 + $0x260] sm:$0xff]
    %v108 = vld [vmem:[%s1 + $0x268] sm:$0xff]
    %v109 = vld [vmem:[%s1 + $0x270] sm:$0xff]
    %v110 = vld [vmem:[%s1 + $0x278] sm:$0xff]
    %v111 = vld [vmem:[%s1 + $0x280] sm:$0xff]
    %v112 = vld [vmem:[%s1 + $0x288] sm:$0xff]
    %v113 = vld [vmem:[%s1 + $0x290] sm:$0xff]
    %v114 = vld [vmem:[%s1 + $0x298] sm:$0xff]
    %v115 = vld [vmem:[%s1 + $0x2a0] sm:$0xff]
    %v116 = vld [vmem:[%s1 + $0x2a8] sm:$0xff]
    %v117 = vld [vmem:[%s1 + $0x2b0] sm:$0xff]
    %v118 = vld [vmem:[%s1 + $0x2b8] sm:$0xff]
    %v119 = vld [vmem:[%s1 + $0x2c0] sm:$0xff]
    %v120 = vld [vmem:[%s1 + $0x2c8] sm:$0xff]
    %v121 = vld [vmem:[%s1 + $0x2d0] sm:$0xff]
    %v122 = vld [vmem:[%s1 + $0x2d8] sm:$0xff]
    %v123 = vld [vmem:[%s1 + $0x2e0] sm:$0xff]
    %v124 = vld [vmem:[%s1 + $0x2e8] sm:$0xff]
    %v125 = vld [vmem:[%s1 + $0x2f0] sm:$0xff]
    %v126 = vld [vmem:[%s1 + $0x2f8] sm:$0xff]
    %v127 = vld [vmem:[%s1 + $0x300] sm:$0xff]
    %v128 = vld [vmem:[%s1 + $0x308] sm:$0xff]
    %v129 = vld [vmem:[%s1 + $0x310] sm:$0xff]
    %v130 = vld [vmem:[%s1 + $0x318] sm:$0xff]
    %v131 = vld [vmem:[%s2] sm:$0x1]
    %v133 = vlaneseq
    %v134 = vshrl.u32 %v133, 7
    %v135 = vsub.s32 0, %v134
    %v136 = vrot.slane %v131, %v135
    %v140 = vcombine.high %v29, %v29
    %v142 = vunpack.c.l.s4 1983009808
    %v143 = vunpack.c.0.s8 %v142
    %v144 = vlaneseq
    %v145 = vshrl.u32 %v144, 7
    %v146 = vsub.s32 %v143, %v145
    %v147 = vrot.slane %v29, %v146
    %v149 = vunpack.c.l.s4 1983009808
    %v150 = vunpack.c.0.s8 %v149
    %v151 = vlaneseq
    %v152 = vshrl.u32 %v151, 7
    %v153 = vsub.s32 %v150, %v152
    %v154 = vrot.slane %v140, %v153
    %v155 = vcombine.high %v147, %v147
    %v156 = vcombine.high %v154, %v154
    %v157 = vcombine.high %v30, %v30
    %v159 = vunpack.c.l.s4 1983009808
    %v160 = vunpack.c.0.s8 %v159
    %v161 = vlaneseq
    %v162 = vshrl.u32 %v161, 7
    %v163 = vsub.s32 %v160, %v162
    %v164 = vrot.slane %v30, %v163
    %v166 = vunpack.c.l.s4 1983009808
    %v167 = vunpack.c.0.s8 %v166
    %v168 = vlaneseq
    %v169 = vshrl.u32 %v168, 7
    %v170 = vsub.s32 %v167, %v169
    %v171 = vrot.slane %v157, %v170
    %v172 = vcombine.high %v164, %v164
    %vm179 = vcmask 261120
    %v180 = vsel %vm179, %v171, 0
    %182 = vmatprep.subr.mxu0 0.0
    %183 = vmatpush1.msra.mxu0 %v31
    %184 = vmatprep.subr.mxu0 0.0
    %185 = vmatpush1.msra.mxu0 %v32
    %186 = vmatprep.subr.mxu0 0.0
    %187 = vmatpush1.msra.mxu0 %v33
    %188 = vmatprep.subr.mxu0 0.0
    %189 = vmatpush1.msra.mxu0 %v34
    %190 = vmatprep.subr.mxu0 0.0
    %191 = vmatpush1.msra.mxu0 %v35
    %192 = vmatprep.subr.mxu0 0.0
    %193 = vmatpush1.msra.mxu0 %v36
    %194 = vmatprep.subr.mxu0 0.0
    %195 = vmatpush1.msra.mxu0 %v37
    %196 = vmatprep.subr.mxu0 0.0
    %197 = vmatpush1.msra.mxu0 %v38
    %198 = vmatprep.subr.mxu0 0.0
    %199 = vmatpush1.msra.mxu0 %v39
    %200 = vmatprep.subr.mxu0 0.0
    %201 = vmatpush1.msra.mxu0 %v40
    %202 = vmatprep.subr.mxu0 0.0
    %203 = vmatpush1.msra.mxu0 %v41
    %204 = vmatprep.subr.mxu0 0.0
    %205 = vmatpush1.msra.mxu0 %v42
    %206 = vmatprep.subr.mxu0 0.0
    %207 = vmatpush1.msra.mxu0 %v43
    %208 = vmatprep.subr.mxu0 0.0
    %209 = vmatpush1.msra.mxu0 %v44
    %210 = vmatprep.subr.mxu0 0.0
    %211 = vmatpush1.msra.mxu0 %v45
    %212 = vmatprep.subr.mxu0 0.0
    %213 = vmatpush1.msra.mxu0 %v46
    %214 = vmatprep.subr.mxu0 0.0
    %215 = vmatpush1.msra.mxu0 %v47
    %216 = vmatprep.subr.mxu0 0.0
    %217 = vmatpush1.msra.mxu0 %v48
    %218 = vmatprep.subr.mxu0 0.0
    %219 = vmatpush1.msra.mxu0 %v49
    %220 = vmatprep.subr.mxu0 0.0
    %221 = vmatpush1.msra.mxu0 %v50
    %222 = vmatprep.subr.mxu0 0.0
    %223 = vmatpush1.msra.mxu0 %v51
    %224 = vmatprep.subr.mxu0 0.0
    %225 = vmatpush1.msra.mxu0 %v52
    %226 = vmatprep.subr.mxu0 0.0
    %227 = vmatpush1.msra.mxu0 %v53
    %228 = vmatprep.subr.mxu0 0.0
    %229 = vmatpush1.msra.mxu0 %v54
    %230 = vmatprep.subr.mxu0 0.0
    %231 = vmatpush1.msra.mxu0 %v55
    %232 = vmatprep.subr.mxu0 0.0
    %233 = vmatpush1.msra.mxu0 %v56
    %234 = vmatprep.subr.mxu0 0.0
    %235 = vmatpush1.msra.mxu0 %v57
    %236 = vmatprep.subr.mxu0 0.0
    %237 = vmatpush1.msra.mxu0 %v58
    %238 = vmatprep.subr.mxu0 0.0
    %239 = vmatpush1.msra.mxu0 %v59
    %240 = vmatprep.subr.mxu0 0.0
    %241 = vmatpush1.msra.mxu0 %v60
    %242 = vmatprep.subr.mxu0 0.0
    %243 = vmatpush1.msra.mxu0 %v61
    %244 = vmatprep.subr.mxu0 0.0
    %245 = vmatpush1.msra.mxu0 %v62
    %246 = vmatprep.mubr.f32.mxu0 %v155
    %247 = vmatmul.mubr.f32.gmra.mrb[0].mxu0 %v147
    %v248 = vpop.f32.mrb[0].mxu0
    %v249 = vadd.f32 %v136, %v248
    %v250 = vpop.f32.mrb[0].mxu0
    %251 = vdwg.mxu0
    %252 = vmatprep.subr.mxu0 0.0
    %253 = vmatpush1.msra.mxu0 %v63
    %254 = vmatprep.subr.mxu0 0.0
    %255 = vmatpush1.msra.mxu0 %v64
    %256 = vmatprep.subr.mxu0 0.0
    %257 = vmatpush1.msra.mxu0 %v65
    %258 = vmatprep.subr.mxu0 0.0
    %259 = vmatpush1.msra.mxu0 %v66
    %260 = vmatprep.subr.mxu0 0.0
    %261 = vmatpush1.msra.mxu0 %v67
    %262 = vmatprep.subr.mxu0 0.0
    %263 = vmatpush1.msra.mxu0 %v68
    %264 = vmatprep.subr.mxu0 0.0
    %265 = vmatpush1.msra.mxu0 %v69
    %266 = vmatprep.subr.mxu0 0.0
    %267 = vmatpush1.msra.mxu0 %v70
    %268 = vmatprep.subr.mxu0 0.0
    %269 = vmatpush1.msra.mxu0 %v71
    %270 = vmatprep.subr.mxu0 0.0
    %271 = vmatpush1.msra.mxu0 %v72
    %272 = vmatprep.subr.mxu0 0.0
    %273 = vmatpush1.msra.mxu0 %v73
    %274 = vmatprep.subr.mxu0 0.0
    %275 = vmatpush1.msra.mxu0 %v74
    %276 = vmatprep.subr.mxu0 0.0
    %277 = vmatpush1.msra.mxu0 %v75
    %278 = vmatprep.subr.mxu0 0.0
    %279 = vmatpush1.msra.mxu0 %v76
    %280 = vmatprep.subr.mxu0 0.0
    %281 = vmatpush1.msra.mxu0 %v77
    %282 = vmatprep.subr.mxu0 0.0
    %283 = vmatpush1.msra.mxu0 %v78
    %284 = vmatprep.subr.mxu0 0.0
    %285 = vmatpush1.msra.mxu0 %v79
    %286 = vmatprep.subr.mxu0 0.0
    %287 = vmatpush1.msra.mxu0 %v80
    %288 = vmatprep.subr.mxu0 0.0
    %289 = vmatpush1.msra.mxu0 %v81
    %290 = vmatprep.subr.mxu0 0.0
    %291 = vmatpush1.msra.mxu0 %v82
    %292 = vmatprep.subr.mxu0 0.0
    %293 = vmatpush1.msra.mxu0 %v83
    %294 = vmatprep.subr.mxu0 0.0
    %295 = vmatpush1.msra.mxu0 %v84
    %296 = vmatprep.subr.mxu0 0.0
    %297 = vmatpush1.msra.mxu0 %v85
    %298 = vmatprep.subr.mxu0 0.0
    %299 = vmatpush1.msra.mxu0 %v86
    %300 = vmatprep.subr.mxu0 0.0
    %301 = vmatpush1.msra.mxu0 %v87
    %302 = vmatprep.subr.mxu0 0.0
    %303 = vmatpush1.msra.mxu0 %v88
    %304 = vmatprep.subr.mxu0 0.0
    %305 = vmatpush1.msra.mxu0 %v89
    %306 = vmatprep.subr.mxu0 0.0
    %307 = vmatpush1.msra.mxu0 %v90
    %308 = vmatprep.subr.mxu0 0.0
    %309 = vmatpush1.msra.mxu0 %v91
    %310 = vmatprep.subr.mxu0 0.0
    %311 = vmatpush1.msra.mxu0 %v92
    %312 = vmatprep.subr.mxu0 0.0
    %313 = vmatpush1.msra.mxu0 %v93
    %314 = vmatprep.subr.mxu0 0.0
    %315 = vmatpush1.msra.mxu0 %v94
    %316 = vmatprep.mubr.f32.mxu0 %v156
    %317 = vmatmul.mubr.f32.gmra.mrb[0].mxu0 %v154
    %v318 = vpop.f32.mrb[0].mxu0
    %v319 = vadd.f32 %v249, %v318
    %v320 = vpop.f32.mrb[0].mxu0
    %321 = vdwg.mxu0
    %322 = vmatprep.subr.mxu0 0.0
    %323 = vmatpush1.msra.mxu0 %v95
    %324 = vmatprep.subr.mxu0 0.0
    %325 = vmatpush1.msra.mxu0 %v96
    %326 = vmatprep.subr.mxu0 0.0
    %327 = vmatpush1.msra.mxu0 %v97
    %328 = vmatprep.subr.mxu0 0.0
    %329 = vmatpush1.msra.mxu0 %v98
    %330 = vmatprep.subr.mxu0 0.0
    %331 = vmatpush1.msra.mxu0 %v99
    %332 = vmatprep.subr.mxu0 0.0
    %333 = vmatpush1.msra.mxu0 %v100
    %334 = vmatprep.subr.mxu0 0.0
    %335 = vmatpush1.msra.mxu0 %v101
    %336 = vmatprep.subr.mxu0 0.0
    %337 = vmatpush1.msra.mxu0 %v102
    %338 = vmatprep.subr.mxu0 0.0
    %339 = vmatpush1.msra.mxu0 %v103
    %340 = vmatprep.subr.mxu0 0.0
    %341 = vmatpush1.msra.mxu0 %v104
    %342 = vmatprep.subr.mxu0 0.0
    %343 = vmatpush1.msra.mxu0 %v105
    %344 = vmatprep.subr.mxu0 0.0
    %345 = vmatpush1.msra.mxu0 %v106
    %346 = vmatprep.subr.mxu0 0.0
    %347 = vmatpush1.msra.mxu0 %v107
    %348 = vmatprep.subr.mxu0 0.0
    %349 = vmatpush1.msra.mxu0 %v108
    %350 = vmatprep.subr.mxu0 0.0
    %351 = vmatpush1.msra.mxu0 %v109
    %352 = vmatprep.subr.mxu0 0.0
    %353 = vmatpush1.msra.mxu0 %v110
    %354 = vmatprep.subr.mxu0 0.0
    %355 = vmatpush1.msra.mxu0 %v111
    %356 = vmatprep.subr.mxu0 0.0
    %357 = vmatpush1.msra.mxu0 %v112
    %358 = vmatprep.subr.mxu0 0.0
    %359 = vmatpush1.msra.mxu0 %v113
    %360 = vmatprep.subr.mxu0 0.0
    %361 = vmatpush1.msra.mxu0 %v114
    %362 = vmatprep.subr.mxu0 0.0
    %363 = vmatpush1.msra.mxu0 %v115
    %364 = vmatprep.subr.mxu0 0.0
    %365 = vmatpush1.msra.mxu0 %v116
    %366 = vmatprep.subr.mxu0 0.0
    %367 = vmatpush1.msra.mxu0 %v117
    %368 = vmatprep.subr.mxu0 0.0
    %369 = vmatpush1.msra.mxu0 %v118
    %370 = vmatprep.subr.mxu0 0.0
    %371 = vmatpush1.msra.mxu0 %v119
    %372 = vmatprep.subr.mxu0 0.0
    %373 = vmatpush1.msra.mxu0 %v120
    %374 = vmatprep.subr.mxu0 0.0
    %375 = vmatpush1.msra.mxu0 %v121
    %376 = vmatprep.subr.mxu0 0.0
    %377 = vmatpush1.msra.mxu0 %v122
    %378 = vmatprep.subr.mxu0 0.0
    %379 = vmatpush1.msra.mxu0 %v123
    %380 = vmatprep.subr.mxu0 0.0
    %381 = vmatpush1.msra.mxu0 %v124
    %382 = vmatprep.subr.mxu0 0.0
    %383 = vmatpush1.msra.mxu0 %v125
    %384 = vmatprep.subr.mxu0 0.0
    %385 = vmatpush1.msra.mxu0 %v126
    %386 = vmatprep.mubr.f32.mxu0 %v172
    %387 = vmatmul.mubr.f32.gmra.mrb[0].mxu0 %v164
    %v388 = vpop.f32.mrb[0].mxu0
    %v389 = vadd.f32 %v319, %v388
    %v390 = vpop.f32.mrb[0].mxu0
    %391 = vdwg.mxu0
    %392 = vmatprep.subr.mxu0 0.0
    %393 = vmatpush1.msra.mxu0 %v127
    %394 = vmatprep.subr.mxu0 0.0
    %395 = vmatpush1.msra.mxu0 %v128
    %396 = vmatprep.subr.mxu0 0.0
    %397 = vmatpush1.msra.mxu0 %v129
    %398 = vmatprep.subr.mxu0 0.0
    %399 = vmatpush1.msra.mxu0 %v130
    %400 = vmatprep.subr.mxu0 0.0
    %401 = vmatpush1.msra.mxu0 0.0
    %402 = vmatprep.subr.mxu0 0.0
    %403 = vmatpush1.msra.mxu0 0.0
    %404 = vmatprep.subr.mxu0 0.0
    %405 = vmatpush1.msra.mxu0 0.0
    %406 = vmatprep.subr.mxu0 0.0
    %407 = vmatpush1.msra.mxu0 0.0
    %408 = vmatprep.subr.mxu0 0.0
    %409 = vmatpush1.msra.mxu0 0.0
    %410 = vmatprep.subr.mxu0 0.0
    %411 = vmatpush1.msra.mxu0 0.0
    %412 = vmatprep.subr.mxu0 0.0
    %413 = vmatpush1.msra.mxu0 0.0
    %414 = vmatprep.subr.mxu0 0.0
    %415 = vmatpush1.msra.mxu0 0.0
    %416 = vmatprep.subr.mxu0 0.0
    %417 = vmatpush1.msra.mxu0 0.0
    %418 = vmatprep.subr.mxu0 0.0
    %419 = vmatpush1.msra.mxu0 0.0
    %420 = vmatprep.subr.mxu0 0.0
    %421 = vmatpush1.msra.mxu0 0.0
    %422 = vmatprep.subr.mxu0 0.0
    %423 = vmatpush1.msra.mxu0 0.0
    %424 = vmatprep.subr.mxu0 0.0
    %425 = vmatpush1.msra.mxu0 0.0
    %426 = vmatprep.subr.mxu0 0.0
    %427 = vmatpush1.msra.mxu0 0.0
    %428 = vmatprep.subr.mxu0 0.0
    %429 = vmatpush1.msra.mxu0 0.0
    %430 = vmatprep.subr.mxu0 0.0
    %431 = vmatpush1.msra.mxu0 0.0
    %432 = vmatprep.subr.mxu0 0.0
    %433 = vmatpush1.msra.mxu0 0.0
    %434 = vmatprep.subr.mxu0 0.0
    %435 = vmatpush1.msra.mxu0 0.0
    %436 = vmatprep.subr.mxu0 0.0
    %437 = vmatpush1.msra.mxu0 0.0
    %438 = vmatprep.subr.mxu0 0.0
    %439 = vmatpush1.msra.mxu0 0.0
    %440 = vmatprep.subr.mxu0 0.0
    %441 = vmatpush1.msra.mxu0 0.0
    %442 = vmatprep.subr.mxu0 0.0
    %443 = vmatpush1.msra.mxu0 0.0
    %444 = vmatprep.subr.mxu0 0.0
    %445 = vmatpush1.msra.mxu0 0.0
    %446 = vmatprep.subr.mxu0 0.0
    %447 = vmatpush1.msra.mxu0 0.0
    %448 = vmatprep.subr.mxu0 0.0
    %449 = vmatpush1.msra.mxu0 0.0
    %450 = vmatprep.subr.mxu0 0.0
    %451 = vmatpush1.msra.mxu0 0.0
    %452 = vmatprep.subr.mxu0 0.0
    %453 = vmatpush1.msra.mxu0 0.0
    %454 = vmatprep.subr.mxu0 0.0
    %455 = vmatpush1.msra.mxu0 0.0
    %456 = vmatprep.mubr.f32.mxu0 0.0
    %457 = vmatmul.mubr.f32.gmra.mrb[0].mxu0 %v180
    %v458 = vpop.f32.mrb[0].mxu0
    %v459 = vadd.f32 %v389, %v458
    %v460 = vpop.f32.mrb[0].mxu0
    %461 = vdwg.mxu0
    %v462 = vmax.f32 %v459, 0.0
    %v463 = vld [vmem:[%s3] sm:$0xff]
    %v464 = vld [vmem:[%s3 + $0x8] sm:$0xff]
    %v465 = vld [vmem:[%s3 + $0x10] sm:$0xff]
    %v466 = vld [vmem:[%s3 + $0x18] sm:$0xff]
    %v467 = vld [vmem:[%s4] sm:$0x1]
    %v469 = vlaneseq
    %v470 = vshrl.u32 %v469, 7
    %v471 = vsub.s32 0, %v470
    %v472 = vrot.slane %v467, %v471
    %v475 = vsel %vm179, %v462, 0
    %477 = vmatprep.subr.mxu0 0.0
    %478 = vmatpush1.msra.mxu0 %v463
    %479 = vmatprep.subr.mxu0 0.0
    %480 = vmatpush1.msra.mxu0 %v464
    %481 = vmatprep.subr.mxu0 0.0
    %482 = vmatpush1.msra.mxu0 %v465
    %483 = vmatprep.subr.mxu0 0.0
    %484 = vmatpush1.msra.mxu0 %v466
    %485 = vmatprep.subr.mxu0 0.0
    %486 = vmatpush1.msra.mxu0 0.0
    %487 = vmatprep.subr.mxu0 0.0
    %488 = vmatpush1.msra.mxu0 0.0
    %489 = vmatprep.subr.mxu0 0.0
    %490 = vmatpush1.msra.mxu0 0.0
    %491 = vmatprep.subr.mxu0 0.0
    %492 = vmatpush1.msra.mxu0 0.0
    %493 = vmatprep.subr.mxu0 0.0
    %494 = vmatpush1.msra.mxu0 0.0
    %495 = vmatprep.subr.mxu0 0.0
    %496 = vmatpush1.msra.mxu0 0.0
    %497 = vmatprep.subr.mxu0 0.0
    %498 = vmatpush1.msra.mxu0 0.0
    %499 = vmatprep.subr.mxu0 0.0
    %500 = vmatpush1.msra.mxu0 0.0
    %501 = vmatprep.subr.mxu0 0.0
    %502 = vmatpush1.msra.mxu0 0.0
    %503 = vmatprep.subr.mxu0 0.0
    %504 = vmatpush1.msra.mxu0 0.0
    %505 = vmatprep.subr.mxu0 0.0
    %506 = vmatpush1.msra.mxu0 0.0
    %507 = vmatprep.subr.mxu0 0.0
    %508 = vmatpush1.msra.mxu0 0.0
    %509 = vmatprep.subr.mxu0 0.0
    %510 = vmatpush1.msra.mxu0 0.0
    %511 = vmatprep.subr.mxu0 0.0
    %512 = vmatpush1.msra.mxu0 0.0
    %513 = vmatprep.subr.mxu0 0.0
    %514 = vmatpush1.msra.mxu0 0.0
    %515 = vmatprep.subr.mxu0 0.0
    %516 = vmatpush1.msra.mxu0 0.0
    %517 = vmatprep.subr.mxu0 0.0
    %518 = vmatpush1.msra.mxu0 0.0
    %519 = vmatprep.subr.mxu0 0.0
    %520 = vmatpush1.msra.mxu0 0.0
    %521 = vmatprep.subr.mxu0 0.0
    %522 = vmatpush1.msra.mxu0 0.0
    %523 = vmatprep.subr.mxu0 0.0
    %524 = vmatpush1.msra.mxu0 0.0
    %525 = vmatprep.subr.mxu0 0.0
    %526 = vmatpush1.msra.mxu0 0.0
    %527 = vmatprep.subr.mxu0 0.0
    %528 = vmatpush1.msra.mxu0 0.0
    %529 = vmatprep.subr.mxu0 0.0
    %530 = vmatpush1.msra.mxu0 0.0
    %531 = vmatprep.subr.mxu0 0.0
    %532 = vmatpush1.msra.mxu0 0.0
    %533 = vmatprep.subr.mxu0 0.0
    %534 = vmatpush1.msra.mxu0 0.0
    %535 = vmatprep.subr.mxu0 0.0
    %536 = vmatpush1.msra.mxu0 0.0
    %537 = vmatprep.subr.mxu0 0.0
    %538 = vmatpush1.msra.mxu0 0.0
    %539 = vmatprep.subr.mxu0 0.0
    %540 = vmatpush1.msra.mxu0 0.0
    %541 = vmatprep.mubr.f32.mxu0 0.0
    %542 = vmatmul.mubr.f32.gmra.mrb[0].mxu0 %v475
    %v543 = vpop.f32.mrb[0].mxu0
    %v544 = vadd.f32 %v472, %v543
    %v545 = vpop.f32.mrb[0].mxu0
    %546 = vdwg.mxu0
    %v547 = vmax.f32 %v544, 0.0
    %v548 = vld [vmem:[%s5] sm:$0x1]
    %v549 = vld [vmem:[#allocation2] sm:$0x1]
    %551 = vset.pattern.permute.xlu0 0
    %552 = vperm.xlu0 %551, %v549
    %v553 = vpop.permute.xlu0 %552
    %v555 = vlaneseq
    %v556 = vshrl.u32 %v555, 7
    %v557 = vsub.s32 0, %v556
    %v558 = vrot.slane %v553, %v557
    %v560 = vsel %vm179, %v548, 0
    %v563 = vsel %vm179, %v547, 0
    %565 = vmatprep.subr.mxu0 0.0
    %566 = vmatpush1.xpose.msra.mxu0 %v563
    %567 = vmatprep.subr.mxu0 0.0
    %568 = vmatpush1.xpose.msra.mxu0 0.0
    %569 = vmatprep.subr.mxu0 0.0
    %570 = vmatpush1.xpose.msra.mxu0 0.0
    %571 = vmatprep.subr.mxu0 0.0
    %572 = vmatpush1.xpose.msra.mxu0 0.0
    %573 = vmatprep.subr.mxu0 0.0
    %574 = vmatpush1.xpose.msra.mxu0 0.0
    %575 = vmatprep.subr.mxu0 0.0
    %576 = vmatpush1.xpose.msra.mxu0 0.0
    %577 = vmatprep.subr.mxu0 0.0
    %578 = vmatpush1.xpose.msra.mxu0 0.0
    %579 = vmatprep.subr.mxu0 0.0
    %580 = vmatpush1.xpose.msra.mxu0 0.0
    %581 = vmatprep.subr.mxu0 0.0
    %582 = vmatpush1.xpose.msra.mxu0 0.0
    %583 = vmatprep.subr.mxu0 0.0
    %584 = vmatpush1.xpose.msra.mxu0 0.0
    %585 = vmatprep.subr.mxu0 0.0
    %586 = vmatpush1.xpose.msra.mxu0 0.0
    %587 = vmatprep.subr.mxu0 0.0
    %588 = vmatpush1.xpose.msra.mxu0 0.0
    %589 = vmatprep.subr.mxu0 0.0
    %590 = vmatpush1.xpose.msra.mxu0 0.0
    %591 = vmatprep.subr.mxu0 0.0
    %592 = vmatpush1.xpose.msra.mxu0 0.0
    %593 = vmatprep.subr.mxu0 0.0
    %594 = vmatpush1.xpose.msra.mxu0 0.0
    %595 = vmatprep.subr.mxu0 0.0
    %596 = vmatpush1.xpose.msra.mxu0 0.0
    %597 = vmatprep.subr.mxu0 0.0
    %598 = vmatpush1.xpose.msra.mxu0 0.0
    %599 = vmatprep.subr.mxu0 0.0
    %600 = vmatpush1.xpose.msra.mxu0 0.0
    %601 = vmatprep.subr.mxu0 0.0
    %602 = vmatpush1.xpose.msra.mxu0 0.0
    %603 = vmatprep.subr.mxu0 0.0
    %604 = vmatpush1.xpose.msra.mxu0 0.0
    %605 = vmatprep.subr.mxu0 0.0
    %606 = vmatpush1.xpose.msra.mxu0 0.0
    %607 = vmatprep.subr.mxu0 0.0
    %608 = vmatpush1.xpose.msra.mxu0 0.0
    %609 = vmatprep.subr.mxu0 0.0
    %610 = vmatpush1.xpose.msra.mxu0 0.0
    %611 = vmatprep.subr.mxu0 0.0
    %612 = vmatpush1.xpose.msra.mxu0 0.0
    %613 = vmatprep.subr.mxu0 0.0
    %614 = vmatpush1.xpose.msra.mxu0 0.0
    %615 = vmatprep.subr.mxu0 0.0
    %616 = vmatpush1.xpose.msra.mxu0 0.0
    %617 = vmatprep.subr.mxu0 0.0
    %618 = vmatpush1.xpose.msra.mxu0 0.0
    %619 = vmatprep.subr.mxu0 0.0
    %620 = vmatpush1.xpose.msra.mxu0 0.0
    %621 = vmatprep.subr.mxu0 0.0
    %622 = vmatpush1.xpose.msra.mxu0 0.0
    %623 = vmatprep.subr.mxu0 0.0
    %624 = vmatpush1.xpose.msra.mxu0 0.0
    %625 = vmatprep.subr.mxu0 0.0
    %626 = vmatpush1.xpose.msra.mxu0 0.0
    %627 = vmatprep.subr.mxu0 0.0
    %628 = vmatpush1.xpose.msra.mxu0 0.0
    %629 = vmatprep.mubr.f32.mxu0 0.0
    %630 = vmatmul.mubr.f32.gmra.mrb[0].mxu0 %v560
    %v631 = vpop.f32.mrb[0].mxu0
    %v632 = vadd.f32 %v558, %v631
    %v633 = vpop.f32.mrb[0].mxu0
    %634 = vdwg.mxu0
    %vm635 = vcmask 8192
    %636 = vst.msk [vmem:[#allocation3] sm:$0x1] %vm635, %v632
    // Predicated region
    $region30: #{tpu_custom_call.1} parent=1 // pred_check
      _
    $region31: #{tpu_custom_call.1} parent=1 // pred_check_branch
      %638 = sbr.rel (0) target = $region33
    $region32: #{tpu_custom_call.1} parent=1 // pred_region
      %s640 = ssub.s32 16, 16
      %641 = vsyncadd [#allocation4], %s640
      %s643 = sshll.u32 [#allocation3], 4
      %s644 = int_to_ptr.vmem [resolvable:$true] %s643
      %646 = dma.vmem_to_hbm [thread:$0]  %s644, 16, %s7, [#allocation4]
    $region33: #{tpu_custom_call.1} parent=1 // pred_fallthru
      _
    // Predicated region
    $region34: #{tpu_custom_call.1} parent=1 // pred_check
      _
    $region35: #{tpu_custom_call.1} parent=1 // pred_check_branch
      %648 = sbr.rel (0) target = $region37
    $region36: #{tpu_custom_call.1} parent=1 // pred_region
      %649 = dma.done [#allocation4], 16
    $region37: #{tpu_custom_call.1} parent=1 // pred_fallthru
      _
    %650 = vsyncpa [#allocation4], 1

</llo_original>
